<compile_context>
chip_gen: v6e
topology: v6e:2x2x1
jax: 0.10.0
libtpu: 0.0.40
codegen_flags: <defaults>
</compile_context>

<pallas_src>
import math

import jax
import jax.numpy as jnp
from jax.experimental import pallas as pl
from jax.experimental.pallas import tpu as pltpu


def _round_up(x, m):
    return ((x + m - 1) // m) * m


def _pick_tile(dim, align, cap):
    """Tile size (multiple of `align`, <= cap) minimizing padded extent; prefer larger tiles."""
    dim_a = _round_up(dim, align)
    if dim_a <= cap:
        return dim_a
    best_t, best_pad = align, 0  # align always divides dim_a -> zero pad
    for t in range(2 * align, cap + 1, align):
        pad = _round_up(dim_a, t) - dim_a
        if pad < best_pad or (pad == best_pad and t > best_t):
            best_t, best_pad = t, pad
    return best_t


def _vmem_limit_bytes(needed):
    """Generation-aware VMEM limit (leave headroom on v7x's 64 MiB, allow >32 MiB on v5e/v6e)."""
    phys = 64 * 1024 * 1024
    try:
        info = pltpu.get_tpu_info()
        phys = int(getattr(info, "vmem_capacity_bytes", phys))
    except Exception:
        pass
    return int(min(max(2 * needed, 4 * 1024 * 1024), phys - 16 * 1024 * 1024))


# --------------------------------------------------------------------------- #
# Kernels
# --------------------------------------------------------------------------- #
def _linear_kernel_single_k(x_ref, w_ref, b_ref, o_ref):
    """Whole K in one tile: dot + bias + cast, no accumulator scratch."""
    o_ref[...] = (
        jnp.dot(x_ref[...], w_ref[...], preferred_element_type=jnp.float32)
        + b_ref[...]
    ).astype(o_ref.dtype)


def _linear_kernel_multi_k(x_ref, w_ref, b_ref, o_ref, acc_ref):
    """K reduced over grid axis 2 with a resident f32 accumulator."""
    k = pl.program_id(2)
    p = jnp.dot(x_ref[...], w_ref[...], preferred_element_type=jnp.float32)

    @pl.when(k == 0)
    def _():
        acc_ref[...] = p          # overwrite: no zero-init store, no extra add

    @pl.when(k != 0)
    def _():
        acc_ref[...] += p

    @pl.when(k == pl.num_programs(2) - 1)
    def _():
        o_ref[...] = (acc_ref[...] + b_ref[...]).astype(o_ref.dtype)


# --------------------------------------------------------------------------- #
# Wrapper
# --------------------------------------------------------------------------- #
def prepare_classifier_params(weight, bias, *, compute_dtype=jnp.bfloat16,
                              tn_cap=512, tk_cap=1024):
    """One-time weight prep: transpose to (K, N), pad to tile multiples, cast.

    Call once per set of weights so the transpose/pad/cast are off the hot path.
    """
    N, K = weight.shape
    tn = _pick_tile(N, 128, tn_cap)
    tk = _pick_tile(K, 128, tk_cap)
    Np = _round_up(N, tn)
    Kp = _round_up(K, tk)

    w_t = weight.T                                           # (K, N)
    if (Kp, Np) != (K, N):
        w_t = jnp.pad(w_t, ((0, Kp - K), (0, Np - N)))
    w_p = w_t.astype(compute_dtype)

    b_p = bias.reshape(1, N).astype(jnp.float32)             # bias stays f32
    if Np != N:
        b_p = jnp.pad(b_p, ((0, 0), (0, Np - N)))

    return {
        "w": w_p, "b": b_p, "N": N, "K": K,
        "tn": tn, "tk": tk, "Np": Np, "Kp": Kp,
        "compute_dtype": compute_dtype,
    }


def apply_classifier(x, params, *, tm_cap=512):
    """y = x @ W^T + b using the prepared params."""
    B, K = x.shape
    assert K == params["K"], "input feature dim mismatch"
    compute_dtype = params["compute_dtype"]
    out_dtype = x.dtype

    tn, tk = params["tn"], params["tk"]
    Np, Kp = params["Np"], params["Kp"]
    N = params["N"]

    # Sublane alignment: 8 for 4-byte, 16 for 2-byte compute dtypes.
    sub = max(8, 32 // jnp.dtype(compute_dtype).itemsize)
    tm = _pick_tile(B, sub, tm_cap)
    Mp = _round_up(B, tm)

    # Keep both TensorCores busy on v7x: if M and N both collapse to one tile,
    # re-split N (padded arrays are unchanged; only the BlockSpec grid changes).
    if Mp // tm == 1 and Np // tn == 1 and Np >= 256:
        for cand in range((Np // 2) // 128 * 128, 127, -128):
            if Np % cand == 0:
                tn = cand
                break

    # Per-call activation prep (skip the pad when already aligned).
    x_p = x
    if (Mp, Kp) != (B, K):
        x_p = jnp.pad(x, ((0, Mp - B), (0, Kp - K)))
    x_p = x_p.astype(compute_dtype)

    w_p, b_p = params["w"], params["b"]

    gm, gn, gk = Mp // tm, Np // tn, Kp // tk
    multi_k = gk > 1

    c_item = jnp.dtype(compute_dtype).itemsize
    o_item = jnp.dtype(out_dtype).itemsize

    # VMEM budget: double-buffered x/w/bias/out tiles (+ f32 acc if multi-K).
    vmem_needed = (
        2 * (tm * tk + tk * tn) * c_item
        + 2 * 8 * tn * 4                      # (1, tn) f32 bias occupies 8 sublanes
        + 2 * tm * tn * o_item
        + (tm * tn * 4 if multi_k else 0)
    )
    vmem_limit = _vmem_limit_bytes(vmem_needed)

    # Honest HBM traffic: x re-read per N tile, W re-read per M tile.
    cost = pl.CostEstimate(
        flops=2 * B * K * N,
        transcendentals=0,
        bytes_accessed=(
            Mp * Kp * c_item * gn
            + Kp * Np * c_item * gm
            + Np * 4
            + Mp * Np * o_item
        ),
    )

    if not multi_k:
        grid_spec = pltpu.PrefetchScalarGridSpec(
            num_scalar_prefetch=0,
            grid=(gm, gn),
            in_specs=[
                pl.BlockSpec((tm, Kp), lambda i, j: (i, 0)),   # x tile (whole K)
                pl.BlockSpec((Kp, tn), lambda i, j: (0, j)),   # W^T tile
                pl.BlockSpec((1, tn), lambda i, j: (0, j)),    # bias tile
            ],
            out_specs=pl.BlockSpec((tm, tn), lambda i, j: (i, j)),
            scratch_shapes=[],
        )
        kernel = _linear_kernel_single_k
        semantics = ("parallel", "parallel")
    else:
        grid_spec = pltpu.PrefetchScalarGridSpec(
            num_scalar_prefetch=0,
            grid=(gm, gn, gk),
            in_specs=[
                pl.BlockSpec((tm, tk), lambda i, j, k: (i, k)),  # x tile
                pl.BlockSpec((tk, tn), lambda i, j, k: (k, j)),  # W^T tile
                pl.BlockSpec((1, tn), lambda i, j, k: (0, j)),   # bias tile
            ],
            out_specs=pl.BlockSpec((tm, tn), lambda i, j, k: (i, j)),
            scratch_shapes=[pltpu.VMEM((tm, tn), jnp.float32)],
        )
        kernel = _linear_kernel_multi_k
        semantics = ("parallel", "parallel", "arbitrary")

    out_p = pl.pallas_call(
        kernel,
        out_shape=jax.ShapeDtypeStruct((Mp, Np), out_dtype),
        grid_spec=grid_spec,
        compiler_params=pltpu.CompilerParams(
            dimension_semantics=semantics,
            vmem_limit_bytes=vmem_limit,
        ),
        cost_estimate=cost,
    )(x_p, w_p, b_p)

    if (Mp, Np) == (B, N):
        return out_p
    return out_p[:B, :N]


def simple_classifier(x, weight, bias, *, compute_dtype=jnp.bfloat16):
    """Convenience one-shot forward: prep params + apply (prefer prepare+apply for reuse)."""
    params = prepare_classifier_params(weight, bias, compute_dtype=compute_dtype)
    return apply_classifier(x, params)


if __name__ == "__main__":
    # Small shapes consistent with the module's forward: x is (batch, num_in).
    batch, num_in, num_out = 8, 32, 16

    key = jax.random.PRNGKey(0)
    kx, kw, kb = jax.random.split(key, 3)

    # Deterministic init mimicking nn.Linear's U(-1/sqrt(fan_in), 1/sqrt(fan_in)).
    bound = 1.0 / math.sqrt(num_in)
    weight = jax.random.uniform(kw, (num_out, num_in), jnp.float32, -bound, bound)
    bias = jax.random.uniform(kb, (num_out,), jnp.float32, -bound, bound)
    x = jax.random.normal(kx, (batch, num_in), jnp.float32)

    ref = x @ weight.T + bias

    # Default bf16-MXU path (loose tolerance: bf16 inputs, f32 accumulation).
    out_bf16 = jax.block_until_ready(simple_classifier(x, weight, bias))
    assert out_bf16.shape == (batch, num_out)
    assert jnp.allclose(out_bf16, ref, atol=2e-2, rtol=2e-2)

    # fp32 compute path matches the PyTorch fp32 reference tightly.
    out_f32 = jax.block_until_ready(
        simple_classifier(x, weight, bias, compute_dtype=jnp.float32))
    assert out_f32.shape == (batch, num_out)
    assert jnp.allclose(out_f32, ref, atol=1e-5, rtol=1e-5)

    print("KERNEL_OK")
</pallas_src>

<mosaic_0001>
module attributes {stable_mosaic.version = 11 : i64} {
  func.func @_linear_kernel_single_k(%arg0: i32, %arg1: i32, %arg2: memref<16x128xbf16, #tpu.memory_space<vmem>>, %arg3: memref<128x128xbf16, #tpu.memory_space<vmem>>, %arg4: memref<1x128xf32, #tpu.memory_space<vmem>>, %arg5: memref<16x128xf32, #tpu.memory_space<vmem>>) attributes {dimension_semantics = [#tpu.dimension_semantics<parallel>, #tpu.dimension_semantics<parallel>], iteration_bounds = array<i64: 1, 1>, scalar_prefetch = 0 : i64, scratch_operands = 0 : i64, tpu.core_type = #tpu.core_type<tc>, window_params = [{transform_indices = @transform_0, window_bounds = array<i64: 16, 128>}, {transform_indices = @transform_1, window_bounds = array<i64: 128, 128>}, {transform_indices = @transform_2, window_bounds = array<i64: 1, 128>}, {transform_indices = @transform_3, window_bounds = array<i64: 16, 128>}]} {
    %c0 = arith.constant 0 : index
    %c0_0 = arith.constant 0 : index
    %0 = vector.load %arg2[%c0, %c0_0] : memref<16x128xbf16, #tpu.memory_space<vmem>>, vector<16x128xbf16>
    %c0_1 = arith.constant 0 : index
    %c0_2 = arith.constant 0 : index
    %1 = vector.load %arg3[%c0_1, %c0_2] : memref<128x128xbf16, #tpu.memory_space<vmem>>, vector<128x128xbf16>
    %cst = arith.constant dense<0.000000e+00> : vector<16x128xf32>
    %2 = tpu.matmul %0, %1, %cst {dimension_numbers = #tpu.dot_dimension_numbers<[1], [0], [0], [1], [0, 0, 1, 1], [], []>} : vector<16x128xbf16>, vector<128x128xbf16>, vector<16x128xf32> -> vector<16x128xf32>
    %c0_3 = arith.constant 0 : index
    %c0_4 = arith.constant 0 : index
    %3 = vector.load %arg4[%c0_3, %c0_4] : memref<1x128xf32, #tpu.memory_space<vmem>>, vector<1x128xf32>
    %4 = vector.broadcast %3 : vector<1x128xf32> to vector<16x128xf32>
    %5 = arith.addf %2, %4 : vector<16x128xf32>
    %c0_5 = arith.constant 0 : index
    %c0_6 = arith.constant 0 : index
    %6 = vector.load %arg5[%c0_5, %c0_6] : memref<16x128xf32, #tpu.memory_space<vmem>>, vector<16x128xf32>
    tpu.vector_store %arg5[%c0_5, %c0_6], %5 {strides = array<i32>} : memref<16x128xf32, #tpu.memory_space<vmem>>, vector<16x128xf32>,
    return
  }
  func.func @transform_0(%arg0: i32, %arg1: i32) -> (i32, i32) {
    %c0_i32 = arith.constant 0 : i32
    %c0_i32_0 = arith.constant 0 : i32
    return %arg0, %c0_i32 : i32, i32
  }
  func.func @transform_1(%arg0: i32, %arg1: i32) -> (i32, i32) {
    %c0_i32 = arith.constant 0 : i32
    %c0_i32_0 = arith.constant 0 : i32
    return %c0_i32, %arg1 : i32, i32
  }
  func.func @transform_2(%arg0: i32, %arg1: i32) -> (i32, i32) {
    %c0_i32 = arith.constant 0 : i32
    %c0_i32_0 = arith.constant 0 : i32
    return %c0_i32, %arg1 : i32, i32
  }
  func.func @transform_3(%arg0: i32, %arg1: i32) -> (i32, i32) {
    %c0_i32 = arith.constant 0 : i32
    return %arg0, %arg1 : i32, i32
  }
}

</mosaic_0001>

<llo_original>
// kernel: tpu_custom_call.1
$region0: #{tpu_custom_call.1}
  #allocation0 [shape = 'u32[]', space=smem, size = 0x4, offset = 0x4, fixed_abs, tag = 'smem constant byte address 0x4 - core index']
  #allocation1 [shape = 'u32[144,128]{1,0:T(1,128)}', space=vmem, size = 0x12000, scoped, tag = 'internal scratch']
  %s0 = inlined_call_operand.hbm [shape: bf16[16,128], index: 0, kind: input, shape index: {}]
  %s1 = inlined_call_operand.hbm [shape: bf16[128,128], index: 1, kind: input, shape index: {}]
  %s2 = inlined_call_operand.vmem [shape: f32[1,128], index: 2, kind: input, shape index: {}]
  %s3 = inlined_call_operand.hbm [shape: f32[16,128], index: 3, kind: output, shape index: {}]
  %s4 = sld [smem:[#allocation0]]
  $region30: #{tpu_custom_call.1} parent=0
    _
  %s6 = ssub.s32 1, %s4
  %s7 = scalar_select 0, %s6, %s4
  $region1: #{tpu_custom_call.1} parent=0
    #allocation2 [shape = 'u8[4096]{0}', space=vmem, size = 0x1000, scoped, tag = 'input window, operand 0, single buffered']
    #allocation3 [shape = 's32[1]{0}', space=sflag, size = 0x4, scoped, tag = 'scoped memory for tpu_custom_call.1']
    #allocation4 [shape = 's32[1]{0}', space=sflag, size = 0x4, scoped, tag = 'scoped memory for tpu_custom_call.1']
    #allocation5 [shape = 'u8[32768]{0}', space=vmem, size = 0x8000, scoped, tag = 'input window, operand 1, single buffered']
    #allocation6 [shape = 's32[1]{0}', space=sflag, size = 0x4, scoped, tag = 'scoped memory for tpu_custom_call.1']
    #allocation7 [shape = 'u8[8192]{0}', space=vmem, size = 0x2000, scoped, tag = 'output window, operand 0, single buffered']
    %8 = vsyncpa [#allocation3], 0
    %9 = vsyncpa [#allocation6], 0
    %10 = vsyncpa [#allocation4], 0
    // Predicated region
    $region2: #{tpu_custom_call.1} parent=1 // pred_check
      _
    $region3: #{tpu_custom_call.1} parent=1 // pred_check_branch
      %12 = sbr.rel (0) target = $region5
    $region4: #{tpu_custom_call.1} parent=1 // pred_region
      %s14 = ssub.s32 128, 128
      %15 = vsyncadd [#allocation3], %s14
      %s16 = sshll.u32 [#allocation2], 4
      %s17 = int_to_ptr.vmem [resolvable:$true] %s16
      %22 = dma.hbm_to_vmem [thread:$0]  %s0, 128, %s17, [#allocation3], 64, 64, 4
    $region5: #{tpu_custom_call.1} parent=1 // pred_fallthru
      _
    // Predicated region
    $region6: #{tpu_custom_call.1} parent=1 // pred_check
      _
    $region7: #{tpu_custom_call.1} parent=1 // pred_check_branch
      %24 = sbr.rel (0) target = $region9
    $region8: #{tpu_custom_call.1} parent=1 // pred_region
      %s26 = ssub.s32 1024, 1024
      %27 = vsyncadd [#allocation6], %s26
      %s28 = sshll.u32 [#allocation5], 4
      %s29 = int_to_ptr.vmem [resolvable:$true] %s28
      %34 = dma.hbm_to_vmem [thread:$0]  %s1, 1024, %s29, [#allocation6], 64, 64, 4
    $region9: #{tpu_custom_call.1} parent=1 // pred_fallthru
      _
    // Predicated region
    $region10: #{tpu_custom_call.1} parent=1 // pred_check
      _
    $region11: #{tpu_custom_call.1} parent=1 // pred_check_branch
      %36 = sbr.rel (0) target = $region13
    $region12: #{tpu_custom_call.1} parent=1 // pred_region
      _
    $region13: #{tpu_custom_call.1} parent=1 // pred_fallthru
      _
    // Predicated region
    $region14: #{tpu_custom_call.1} parent=1 // pred_check
      _
    $region15: #{tpu_custom_call.1} parent=1 // pred_check_branch
      %38 = sbr.rel (0) target = $region17
    $region16: #{tpu_custom_call.1} parent=1 // pred_region
      %39 = dma.done [#allocation3], 128
    $region17: #{tpu_custom_call.1} parent=1 // pred_fallthru
      _
    // Predicated region
    $region18: #{tpu_custom_call.1} parent=1 // pred_check
      _
    $region19: #{tpu_custom_call.1} parent=1 // pred_check_branch
      %41 = sbr.rel (0) target = $region21
    $region20: #{tpu_custom_call.1} parent=1 // pred_region
      %42 = dma.done [#allocation6], 1024
    $region21: #{tpu_custom_call.1} parent=1 // pred_fallthru
      _
    %v44 = vld [vmem:[#allocation2] sm:$0xf]
    %v45 = vld [vmem:[#allocation2 + $0x4] sm:$0xf]
    %v46 = vld [vmem:[#allocation5] sm:$0xf]
    %v47 = vld [vmem:[#allocation5 + $0x4] sm:$0xf]
    %v48 = vld [vmem:[#allocation5 + $0x8] sm:$0xf]
    %v49 = vld [vmem:[#allocation5 + $0xc] sm:$0xf]
    %v50 = vld [vmem:[#allocation5 + $0x10] sm:$0xf]
    %v51 = vld [vmem:[#allocation5 + $0x14] sm:$0xf]
    %v52 = vld [vmem:[#allocation5 + $0x18] sm:$0xf]
    %v53 = vld [vmem:[#allocation5 + $0x1c] sm:$0xf]
    %v54 = vld [vmem:[#allocation5 + $0x20] sm:$0xf]
    %v55 = vld [vmem:[#allocation5 + $0x24] sm:$0xf]
    %v56 = vld [vmem:[#allocation5 + $0x28] sm:$0xf]
    %v57 = vld [vmem:[#allocation5 + $0x2c] sm:$0xf]
    %v58 = vld [vmem:[#allocation5 + $0x30] sm:$0xf]
    %v59 = vld [vmem:[#allocation5 + $0x34] sm:$0xf]
    %v60 = vld [vmem:[#allocation5 + $0x38] sm:$0xf]
    %v61 = vld [vmem:[#allocation5 + $0x3c] sm:$0xf]
    %v62 = vld [vmem:[%s2] sm:$0x1]
    %v64 = vlaneseq
    %v65 = vshrl.u32 %v64, 7
    %v66 = vsub.s32 0, %v65
    %v67 = vrot.slane %v62, %v66
    %v71 = vunpack.c.l.b16 %v44
    %v72 = vunpack.c.l.b16 %v45
    %v73 = vpack.c.b16 %v72, %v71
    %v91 = vunpack.c.l.b16 %v46
    %v92 = vunpack.c.l.b16 %v47
    %v93 = vunpack.c.l.b16 %v48
    %v94 = vunpack.c.l.b16 %v49
    %v95 = vunpack.c.l.b16 %v50
    %v96 = vunpack.c.l.b16 %v51
    %v97 = vunpack.c.l.b16 %v52
    %v98 = vunpack.c.l.b16 %v53
    %v99 = vunpack.c.l.b16 %v54
    %v100 = vunpack.c.l.b16 %v55
    %v101 = vunpack.c.l.b16 %v56
    %v102 = vunpack.c.l.b16 %v57
    %v103 = vunpack.c.l.b16 %v58
    %v104 = vunpack.c.l.b16 %v59
    %v105 = vunpack.c.l.b16 %v60
    %v106 = vunpack.c.l.b16 %v61
    %v107 = vpack.c.b16 %v92, %v91
    %v108 = vpack.c.b16 %v94, %v93
    %v109 = vpack.c.b16 %v96, %v95
    %v110 = vpack.c.b16 %v98, %v97
    %v111 = vpack.c.b16 %v100, %v99
    %v112 = vpack.c.b16 %v102, %v101
    %v113 = vpack.c.b16 %v104, %v103
    %v114 = vpack.c.b16 %v106, %v105
    %123 = vmatprep.subr.bf16.mxu0 0
    %124 = vmatpush1.bf16.msra.mxu0 %v114
    %125 = vmatprep.subr.bf16.mxu0 0
    %126 = vmatpush1.bf16.msra.mxu0 %v113
    %127 = vmatprep.subr.bf16.mxu0 0
    %128 = vmatpush1.bf16.msra.mxu0 %v112
    %129 = vmatprep.subr.bf16.mxu0 0
    %130 = vmatpush1.bf16.msra.mxu0 %v111
    %131 = vmatprep.subr.bf16.mxu0 0
    %132 = vmatpush1.bf16.msra.mxu0 %v110
    %133 = vmatprep.subr.bf16.mxu0 0
    %134 = vmatpush1.bf16.msra.mxu0 %v109
    %135 = vmatprep.subr.bf16.mxu0 0
    %136 = vmatpush1.bf16.msra.mxu0 %v108
    %137 = vmatprep.subr.bf16.mxu0 0
    %138 = vmatpush1.bf16.msra.mxu0 %v107
    %139 = vmatprep.subr.bf16.mxu0 0
    %140 = vmatpush2.bf16.msra.mxu0 0
    %141 = vmatprep.subr.bf16.mxu0 0
    %142 = vmatpush2.bf16.msra.mxu0 0
    %143 = vmatprep.subr.bf16.mxu0 0
    %144 = vmatpush2.bf16.msra.mxu0 0
    %145 = vmatprep.subr.bf16.mxu0 0
    %146 = vmatpush2.bf16.msra.mxu0 0
    %147 = vmatprep.subr.bf16.mxu0 0
    %148 = vmatpush2.bf16.msra.mxu0 0
    %149 = vmatprep.subr.bf16.mxu0 0
    %150 = vmatpush2.bf16.msra.mxu0 0
    %151 = vmatprep.subr.bf16.mxu0 0
    %152 = vmatpush2.bf16.msra.mxu0 0
    %153 = vmatprep.subr.bf16.mxu0 0
    %154 = vmatpush2.bf16.msra.mxu0 0
    %155 = vmatprep.mubr.bf16.mxu0 0
    %156 = vmatmul.mubr.bf16.gmra.mxu0 %v73
    %v157 = vpop.f32.mrf.mxu0
    %v158 = vadd.f32 %v67, %v157
    %v159 = vpop.f32.mrf.mxu0
    %v160 = vpop.f32.mrf.mxu0
    %v161 = vadd.f32 %v67, %v160
    %v162 = vpop.f32.mrf.mxu0
    %163 = vdwg.mxu0
    %164 = vst [vmem:[#allocation7] sm:$0xff] %v158
    %165 = vst [vmem:[#allocation7 + $0x8] sm:$0xff] %v161
    // Predicated region
    $region22: #{tpu_custom_call.1} parent=1 // pred_check
      _
    $region23: #{tpu_custom_call.1} parent=1 // pred_check_branch
      %167 = sbr.rel (0) target = $region25
    $region24: #{tpu_custom_call.1} parent=1 // pred_region
      %s169 = ssub.s32 256, 256
      %170 = vsyncadd [#allocation4], %s169
      %s171 = sshll.u32 [#allocation7], 4
      %s172 = int_to_ptr.vmem [resolvable:$true] %s171
      %177 = dma.vmem_to_hbm [thread:$0]  %s172, 256, %s3, [#allocation4], 128, 128, 8
    $region25: #{tpu_custom_call.1} parent=1 // pred_fallthru
      _
    // Predicated region
    $region26: #{tpu_custom_call.1} parent=1 // pred_check
      _
    $region27: #{tpu_custom_call.1} parent=1 // pred_check_branch
      %179 = sbr.rel (0) target = $region29
    $region28: #{tpu_custom_call.1} parent=1 // pred_region
      %180 = dma.done [#allocation4], 256
    $region29: #{tpu_custom_call.1} parent=1 // pred_fallthru
      _
    %181 = vsyncpa [#allocation3], 1
    %182 = vsyncpa [#allocation6], 1
    %183 = vsyncpa [#allocation4], 1

</llo_original>
